<compile_context>
chip_gen: v7x
topology: tpu7x:2x2x1
jax: 0.10.0
libtpu: 0.0.40
codegen_flags: <defaults>
</compile_context>

<pallas_src>
import functools
import math

import jax
import jax.numpy as jnp
from jax.experimental import pallas as pl
from jax.experimental.pallas import tpu as pltpu

_LOG_LO = math.log(1e-8)
_LOG_HI = math.log(1.0 - 1e-8)


def _round_up(x, m):
    return (x + m - 1) // m * m


def _focal_loss_kernel(*refs, gamma, hw_tile, hw_total, n_inner,
                       use_class_weight, mask_possible):
    if use_class_weight:
        logit_ref, tgt_ref, cw_ref, out_ref = refs
    else:
        logit_ref, tgt_ref, out_ref = refs
        cw_ref = None

    o = pl.program_id(1)          # outer spatial split ("parallel")
    i = pl.program_id(2)          # inner spatial sweep (reduction axis)

    @pl.when(i == 0)
    def _():
        out_ref[...] = jnp.zeros_like(out_ref)

    x = logit_ref[...].astype(jnp.float32)            # (C, hw_tile)
    t = tgt_ref[...]                                  # (1, hw_tile) int32

    # Boolean one-hot of the target class along the sublane (class) axis;
    # equivalent to scatter_(1, target, 1.0) in the reference module, but
    # without materializing a float one-hot (no cast, no dense multiply).
    iota_c = jax.lax.broadcasted_iota(jnp.int32, x.shape, 0)
    onehot = iota_c == t                              # (C, hw_tile) bool

    # log-softmax of the target logit via logsumexp over the class axis
    # (the dense probability matrix is never formed).
    m = jnp.max(x, axis=0, keepdims=True)             # (1, hw_tile)
    lse = m + jnp.log(jnp.sum(jnp.exp(x - m), axis=0, keepdims=True))
    x_t = jnp.max(jnp.where(onehot, x, -jnp.inf), axis=0, keepdims=True)

    # Clamp in log space (== torch.clamp on the probability, up to rounding).
    log_p = jnp.clip(x_t - lse, _LOG_LO, _LOG_HI)     # (1, hw_tile)
    p = jnp.exp(log_p)

    one_m_p = 1.0 - p
    g = float(gamma)
    if g == 0.0:
        focal = jnp.ones_like(p)
    elif g == int(g) and 1.0 <= g <= 8.0:
        # integer gamma: repeated multiply instead of exp(g*log(.))
        focal = one_m_p
        for _ in range(int(g) - 1):
            focal = focal * one_m_p
    else:
        focal = jnp.power(one_m_p, g)

    loss = -focal * log_p                             # (1, hw_tile)

    if use_class_weight:
        # class weights are nonnegative; exactly one class is selected per lane.
        w = jnp.sum(jnp.where(onehot, cw_ref[...], 0.0), axis=0, keepdims=True)
        loss = loss * w

    if mask_possible:
        jg = o * n_inner + i                          # global spatial block index
        end_off = (jg + 1) * hw_tile

        @pl.when(end_off <= hw_total)                 # full interior block: no mask
        def _():
            out_ref[...] += loss

        @pl.when(end_off > hw_total)                  # ragged / over-coverage block
        def _():
            lane = jax.lax.broadcasted_iota(jnp.int32, loss.shape, 1)
            valid = (jg * hw_tile + lane) < hw_total
            out_ref[...] += jnp.where(valid, loss, 0.0)
    else:
        out_ref[...] += loss


def focal_loss_2d(logit_nchw, target, class_weight=None, gamma=2,
                  size_average=True, hw_tile_target=None):
    """Focal loss (type='softmax') over NCHW logits, mean over all B*H*W pixels."""
    assert size_average, "only size_average=True path implemented"
    # TODO(synk): the type='sigmoid' branch of FocalLoss2d.forward is not implemented.

    B, C, H, W = logit_nchw.shape
    HW = H * W
    N = B * HW
    itemsize = jnp.dtype(logit_nchw.dtype).itemsize

    # Generation-aware VMEM budget (v7x: 64 MiB; v5e/v6e: 128 MiB).
    try:
        vmem_cap = int(pltpu.get_tpu_info().vmem_capacity_bytes)
    except Exception:
        vmem_cap = 64 * 1024 * 1024   # conservative (v7x) fallback

    # Spatial tile: as large as a double-buffered logit block allows, capped,
    # always a multiple of 128 lanes.
    if hw_tile_target is None:
        logit_budget = min(int(vmem_cap * 0.35), 48 * 1024 * 1024)
        hw_tile_target = logit_budget // max(2 * C * itemsize, 1)
        hw_tile_target = max(512, min(32768, hw_tile_target))
    hw_tile = min(int(hw_tile_target), _round_up(HW, 128))
    hw_tile = max(128, hw_tile // 128 * 128)

    n_spatial = pl.cdiv(HW, hw_tile)

    # Give multi-TensorCore chips (v7x) a parallel axis even when B == 1 by
    # splitting the spatial sweep into (outer parallel, inner arbitrary).
    n_outer = 2 if (B == 1 and n_spatial >= 2) else 1
    n_inner = pl.cdiv(n_spatial, n_outer)
    overcover = (n_outer * n_inner) > n_spatial
    mask_possible = (n_outer * n_inner * hw_tile) != HW

    # Native-layout views: no NCHW->NHWC transpose, no pad copy, no HBM upcast.
    logit = logit_nchw.reshape(B, C, HW)
    tgt = target.reshape(B, 1, HW).astype(jnp.int32)

    use_class_weight = class_weight is not None

    def spatial_idx(o, i):
        jg = o * n_inner + i
        if overcover:
            # Redundant tail blocks re-read the last real block; their lanes
            # are fully masked to zero in the kernel (offset derived from the
            # UNclamped index), so they contribute nothing.
            jg = jnp.minimum(jg, n_spatial - 1)
        return jg

    in_specs = [
        pl.BlockSpec((None, C, hw_tile), lambda b, o, i: (b, 0, spatial_idx(o, i))),
        pl.BlockSpec((None, 1, hw_tile), lambda b, o, i: (b, 0, spatial_idx(o, i))),
    ]
    inputs = [logit, tgt]
    if use_class_weight:
        cw = jnp.asarray(class_weight, jnp.float32).reshape(C, 1)
        in_specs.append(pl.BlockSpec((C, 1), lambda b, o, i: (0, 0)))
        inputs.append(cw)

    kernel = functools.partial(
        _focal_loss_kernel,
        gamma=float(gamma),
        hw_tile=hw_tile,
        hw_total=HW,
        n_inner=n_inner,
        use_class_weight=use_class_weight,
        mask_possible=mask_possible,
    )

    # Explicit VMEM cap: double-buffered logit + target blocks, accumulator,
    # class weights, plus 50% headroom -- but never more than 80% of the chip.
    need = hw_tile * (2 * C * itemsize + 4 * 4) + 2 * C * 4
    vmem_limit = int(min(max(int(1.5 * need), 16 * 1024 * 1024),
                         int(vmem_cap * 0.8)))

    partials = pl.pallas_call(
        kernel,
        out_shape=jax.ShapeDtypeStruct((B, n_outer, 1, hw_tile), jnp.float32),
        grid_spec=pltpu.PrefetchScalarGridSpec(
            num_scalar_prefetch=0,
            grid=(B, n_outer, n_inner),
            in_specs=in_specs,
            out_specs=pl.BlockSpec((None, None, 1, hw_tile),
                                   lambda b, o, i: (b, o, 0, 0)),
        ),
        compiler_params=pltpu.CompilerParams(
            dimension_semantics=("parallel", "parallel", "arbitrary"),
            vmem_limit_bytes=vmem_limit,
        ),
    )(*inputs)

    # Tiny final reduce + mean over the TRUE element count (padding/overcover
    # lanes were zeroed in-kernel).
    return jnp.sum(partials) / jnp.float32(N)


def _reference(logit_nchw, target, class_weight=None, gamma=2):
    B, C, H, W = logit_nchw.shape
    N = B * H * W
    logit = jnp.transpose(logit_nchw, (0, 2, 3, 1)).reshape(N, C).astype(jnp.float32)
    prob = jax.nn.softmax(logit, axis=1)
    t = target.reshape(N)
    p = jnp.clip(prob[jnp.arange(N), t], 1e-8, 1.0 - 1e-8)
    if class_weight is None:
        w = jnp.ones((N,), jnp.float32)
    else:
        w = jnp.asarray(class_weight, jnp.float32)[t]
    loss = -w * jnp.power(1.0 - p, gamma) * jnp.log(p)
    return jnp.mean(loss)


if __name__ == "__main__":
    key = jax.random.PRNGKey(0)
    k1, k2, k3, k4, k5, k6, k7, k8 = jax.random.split(key, 8)

    # Case 1: canonical small shapes, default (uniform) class weights.
    B, C, H, W = 2, 4, 16, 16
    logit = jax.random.normal(k1, (B, C, H, W), jnp.float32)
    target = jax.random.randint(k2, (B, H, W), 0, C, jnp.int32)
    loss = jax.block_until_ready(focal_loss_2d(logit, target, gamma=2))
    ref = _reference(logit, target, gamma=2)
    assert jnp.allclose(loss, ref, rtol=1e-5, atol=1e-6), (loss, ref)

    # Case 2: non-128-divisible spatial size (ragged boundary block, no pad)
    # with explicit class weights.
    B2, C2, H2, W2 = 2, 5, 7, 9
    logit2 = jax.random.normal(k3, (B2, C2, H2, W2), jnp.float32)
    target2 = jax.random.randint(k4, (B2, H2, W2), 0, C2, jnp.int32)
    cw2 = [0.5, 1.0, 2.0, 1.5, 0.25]
    loss2 = jax.block_until_ready(
        focal_loss_2d(logit2, target2, class_weight=cw2, gamma=2))
    ref2 = _reference(logit2, target2, class_weight=cw2, gamma=2)
    assert jnp.allclose(loss2, ref2, rtol=1e-5, atol=1e-6), (loss2, ref2)

    # Case 3: B=1 with a forced small tile -> exercises the multi-block
    # accumulation, the (outer parallel, inner arbitrary) spatial split,
    # the clamped index_map for over-coverage blocks, and the last-block mask.
    B3, C3, H3, W3 = 1, 4, 16, 24          # HW = 384, tile 128 -> 3 blocks
    logit3 = jax.random.normal(k5, (B3, C3, H3, W3), jnp.float32)
    target3 = jax.random.randint(k6, (B3, H3, W3), 0, C3, jnp.int32)
    loss3 = jax.block_until_ready(
        focal_loss_2d(logit3, target3, gamma=2, hw_tile_target=128))
    ref3 = _reference(logit3, target3, gamma=2)
    assert jnp.allclose(loss3, ref3, rtol=1e-5, atol=1e-6), (loss3, ref3)

    # Case 4: bf16 logits DMA'd in native dtype, upcast on-chip.
    B4, C4, H4, W4 = 1, 8, 24, 32
    logit4 = jax.random.normal(k7, (B4, C4, H4, W4), jnp.float32).astype(jnp.bfloat16)
    target4 = jax.random.randint(k8, (B4, H4, W4), 0, C4, jnp.int32)
    loss4 = jax.block_until_ready(focal_loss_2d(logit4, target4, gamma=2))
    ref4 = _reference(logit4, target4, gamma=2)
    assert jnp.allclose(loss4, ref4, rtol=1e-4, atol=1e-5), (loss4, ref4)

    print("KERNEL_OK")
</pallas_src>

<mosaic_0001>
module attributes {stable_mosaic.version = 11 : i64} {
  func.func @_focal_loss_kernel(%arg0: i32, %arg1: i32, %arg2: i32, %arg3: memref<1x4x256xf32, #tpu.memory_space<vmem>>, %arg4: memref<1x1x256xi32, #tpu.memory_space<vmem>>, %arg5: memref<1x1x1x256xf32, #tpu.memory_space<vmem>>) attributes {dimension_semantics = [#tpu.dimension_semantics<parallel>, #tpu.dimension_semantics<parallel>, #tpu.dimension_semantics<arbitrary>], iteration_bounds = array<i64: 2, 1, 1>, scalar_prefetch = 0 : i64, scratch_operands = 0 : i64, tpu.core_type = #tpu.core_type<tc>, window_params = [{transform_indices = @transform_0, window_bounds = array<i64: 1, 4, 256>}, {transform_indices = @transform_1, window_bounds = array<i64: 1, 1, 256>}, {transform_indices = @transform_2, window_bounds = array<i64: 1, 1, 1, 256>}]} {
    %c0_i32 = arith.constant 0 : i32
    %0 = arith.cmpi eq, %arg2, %c0_i32 : i32
    %1 = arith.extui %0 : i1 to i32
    %c0_i32_0 = arith.constant 0 : i32
    %2 = arith.cmpi ne, %1, %c0_i32_0 : i32
    scf.if %2 {
      %cst_21 = arith.constant 0.000000e+00 : f32
      %41 = vector.broadcast %cst_21 : f32 to vector<1x256xf32>
      %c0_22 = arith.constant 0 : index
      %c0_23 = arith.constant 0 : index
      %c0_24 = arith.constant 0 : index
      %c0_25 = arith.constant 0 : index
      %42 = vector.load %arg5[%c0_22, %c0_23, %c0_24, %c0_25] : memref<1x1x1x256xf32, #tpu.memory_space<vmem>>, vector<1x1x1x256xf32>
      %43 = vector.shape_cast %42 : vector<1x1x1x256xf32> to vector<1x256xf32>
      %44 = vector.shape_cast %41 : vector<1x256xf32> to vector<1x1x1x256xf32>
      tpu.vector_store %arg5[%c0_22, %c0_23, %c0_24, %c0_25], %44 {strides = array<i32>} : memref<1x1x1x256xf32, #tpu.memory_space<vmem>>, vector<1x1x1x256xf32>,
    } else {
    }
    %c0 = arith.constant 0 : index
    %c0_1 = arith.constant 0 : index
    %c0_2 = arith.constant 0 : index
    %3 = vector.load %arg3[%c0, %c0_1, %c0_2] : memref<1x4x256xf32, #tpu.memory_space<vmem>>, vector<1x4x256xf32>
    %4 = vector.shape_cast %3 : vector<1x4x256xf32> to vector<4x256xf32>
    %c0_3 = arith.constant 0 : index
    %c0_4 = arith.constant 0 : index
    %c0_5 = arith.constant 0 : index
    %5 = vector.load %arg4[%c0_3, %c0_4, %c0_5] : memref<1x1x256xi32, #tpu.memory_space<vmem>>, vector<1x1x256xi32>
    %6 = vector.shape_cast %5 : vector<1x1x256xi32> to vector<1x256xi32>
    %7 = tpu.iota {dimensions = array<i32: 0>} : vector<4x256xi32>
    %8 = vector.broadcast %6 : vector<1x256xi32> to vector<4x256xi32>
    %9 = arith.cmpi eq, %7, %8 : vector<4x256xi32>
    %cst = arith.constant dense<0xFF800000> : vector<256xf32>
    %10 = vector.multi_reduction <maximumf>, %4, %cst [0] : vector<4x256xf32> to vector<256xf32>
    %11 = vector.shape_cast %10 : vector<256xf32> to vector<1x256xf32>
    %12 = vector.broadcast %11 : vector<1x256xf32> to vector<4x256xf32>
    %13 = arith.subf %4, %12 : vector<4x256xf32>
    %14 = math.exp %13 : vector<4x256xf32>
    %cst_6 = arith.constant dense<0.000000e+00> : vector<256xf32>
    %15 = vector.multi_reduction <add>, %14, %cst_6 [0] : vector<4x256xf32> to vector<256xf32>
    %16 = vector.shape_cast %15 : vector<256xf32> to vector<1x256xf32>
    %17 = math.log %16 : vector<1x256xf32>
    %18 = arith.addf %11, %17 : vector<1x256xf32>
    %cst_7 = arith.constant 0xFF800000 : f32
    %19 = vector.broadcast %cst_7 : f32 to vector<4x256xf32>
    %20 = arith.select %9, %4, %19 : vector<4x256xi1>, vector<4x256xf32>
    %cst_8 = arith.constant dense<0xFF800000> : vector<256xf32>
    %21 = vector.multi_reduction <maximumf>, %20, %cst_8 [0] : vector<4x256xf32> to vector<256xf32>
    %22 = vector.shape_cast %21 : vector<256xf32> to vector<1x256xf32>
    %23 = arith.subf %22, %18 : vector<1x256xf32>
    %cst_9 = arith.constant -18.420681 : f32
    %cst_10 = arith.constant -9.99999993E-9 : f32
    %24 = vector.broadcast %cst_9 : f32 to vector<1x256xf32>
    %25 = arith.maximumf %24, %23 : vector<1x256xf32>
    %26 = vector.broadcast %cst_10 : f32 to vector<1x256xf32>
    %27 = arith.minimumf %26, %25 : vector<1x256xf32>
    %28 = math.exp %27 : vector<1x256xf32>
    %cst_11 = arith.constant 1.000000e+00 : f32
    %29 = vector.broadcast %cst_11 : f32 to vector<1x256xf32>
    %30 = arith.subf %29, %28 : vector<1x256xf32>
    %31 = arith.mulf %30, %30 : vector<1x256xf32>
    %cst_12 = arith.constant 0.000000e+00 : f32
    %32 = vector.broadcast %cst_12 : f32 to vector<1x256xf32>
    %33 = arith.subf %32, %31 : vector<1x256xf32>
    %34 = arith.mulf %33, %27 : vector<1x256xf32>
    %c0_13 = arith.constant 0 : index
    %c0_14 = arith.constant 0 : index
    %c0_15 = arith.constant 0 : index
    %c0_16 = arith.constant 0 : index
    %35 = vector.load %arg5[%c0_13, %c0_14, %c0_15, %c0_16] : memref<1x1x1x256xf32, #tpu.memory_space<vmem>>, vector<1x1x1x256xf32>
    %36 = vector.shape_cast %35 : vector<1x1x1x256xf32> to vector<1x256xf32>
    %37 = arith.addf %36, %34 : vector<1x256xf32>
    %c0_17 = arith.constant 0 : index
    %c0_18 = arith.constant 0 : index
    %c0_19 = arith.constant 0 : index
    %c0_20 = arith.constant 0 : index
    %38 = vector.load %arg5[%c0_17, %c0_18, %c0_19, %c0_20] : memref<1x1x1x256xf32, #tpu.memory_space<vmem>>, vector<1x1x1x256xf32>
    %39 = vector.shape_cast %38 : vector<1x1x1x256xf32> to vector<1x256xf32>
    %40 = vector.shape_cast %37 : vector<1x256xf32> to vector<1x1x1x256xf32>
    tpu.vector_store %arg5[%c0_17, %c0_18, %c0_19, %c0_20], %40 {strides = array<i32>} : memref<1x1x1x256xf32, #tpu.memory_space<vmem>>, vector<1x1x1x256xf32>,
    return
  }
  func.func @transform_0(%arg0: i32, %arg1: i32, %arg2: i32) -> (i32, i32, i32) {
    %c1_i32 = arith.constant 1 : i32
    %0 = arith.muli %arg1, %c1_i32 : i32
    %1 = arith.addi %0, %arg2 : i32
    %c0_i32 = arith.constant 0 : i32
    %c0_i32_0 = arith.constant 0 : i32
    return %arg0, %c0_i32, %1 : i32, i32, i32
  }
  func.func @transform_1(%arg0: i32, %arg1: i32, %arg2: i32) -> (i32, i32, i32) {
    %c1_i32 = arith.constant 1 : i32
    %0 = arith.muli %arg1, %c1_i32 : i32
    %1 = arith.addi %0, %arg2 : i32
    %c0_i32 = arith.constant 0 : i32
    %c0_i32_0 = arith.constant 0 : i32
    return %arg0, %c0_i32, %1 : i32, i32, i32
  }
  func.func @transform_2(%arg0: i32, %arg1: i32, %arg2: i32) -> (i32, i32, i32, i32) {
    %c0_i32 = arith.constant 0 : i32
    %c0_i32_0 = arith.constant 0 : i32
    %c0_i32_1 = arith.constant 0 : i32
    return %arg0, %arg1, %c0_i32, %c0_i32_0 : i32, i32, i32, i32
  }
}

</mosaic_0001>

<llo_original>
// kernel: tpu_custom_call.1
$region0: #{tpu_custom_call.1}
  #allocation0 [shape = 'u32[]', space=smem, size = 0x4, offset = 0x4, fixed_abs, tag = 'smem constant byte address 0x4 - core index']
  #allocation1 [shape = 'u32[144,128]{1,0:T(1,128)}', space=vmem, size = 0x12000, scoped, tag = 'internal scratch']
  %s0 = inlined_call_operand.hbm [shape: f32[2,4,256], index: 0, kind: input, shape index: {}]
  %s1 = inlined_call_operand.hbm [shape: s32[2,1,256], index: 1, kind: input, shape index: {}]
  %s2 = inlined_call_operand.hbm [shape: f32[2,1,1,256], index: 2, kind: output, shape index: {}]
  %s3 = sld [smem:[#allocation0]]
  $region53: #{tpu_custom_call.1} parent=0
    _
  %s5 = ssub.s32 1, %s3
  %s6 = scalar_select 0, %s5, %s3
  $region1: #{tpu_custom_call.1} parent=0
    #allocation2 [shape = 'u8[8192]{0}', space=vmem, size = 0x2000, scoped, tag = 'input window, operand 0']
    #allocation3 [shape = 's32[2]{0}', space=sflag, size = 0x8, scoped, tag = 'scoped memory for tpu_custom_call.1']
    #allocation4 [shape = 's32[2]{0}', space=sflag, size = 0x8, scoped, tag = 'scoped memory for tpu_custom_call.1']
    #allocation5 [shape = 'u8[2048]{0}', space=vmem, size = 0x800, scoped, tag = 'input window, operand 1']
    #allocation6 [shape = 's32[2]{0}', space=sflag, size = 0x8, scoped, tag = 'scoped memory for tpu_custom_call.1']
    #allocation7 [shape = 'u8[2048]{0}', space=vmem, size = 0x800, scoped, tag = 'output window, operand 0']
    %7 = vsyncpa [#allocation3], 0
    %s8 = scalar_lea.sflag [#allocation3], 1
    %9 = vsyncpa %s8, 0
    %10 = vsyncpa [#allocation6], 0
    %s11 = scalar_lea.sflag [#allocation6], 1
    %12 = vsyncpa %s11, 0
    %13 = vsyncpa [#allocation4], 0
    %s14 = scalar_lea.sflag [#allocation4], 1
    %15 = vsyncpa %s14, 0
    loop: start=0, step=1, limit=4
    $region2: #{tpu_custom_call.1} parent=1 // loop_pre_header
      _
    $region3: #{tpu_custom_call.1} parent=1 // loop_header
      %s17 = sphi 0, %s21
      %p18 = scmp.ge.s32.totalorder %s17, 4
      %s24 = sphi 0, %s43
      %s25 = sphi 0, %s39
      %s26 = sphi 0, %s35
      %s27 = sphi 0, %s24
      %s28 = sphi 0, %s25
      %s29 = sphi 0, %s26
      %s30 = sphi 0, %s27
      %s31 = sphi 0, %s28
      %s32 = sphi 0, %s29
      %s50 = sphi 0, %s52
      %s53 = sphi 0, %s50
      %s54 = sphi 0, %s53
      %s70 = sphi 0, %s54
      %s80 = sphi 0, %s82
      %s83 = sphi 0, %s80
      %s84 = sphi 0, %s83
      %s100 = sphi 0, %s84
      %s108 = sphi 0, %s110
      %s111 = sphi 0, %s108
      %s112 = sphi 0, %s111
      %s128 = sphi 0, %s112
    $region4: #{tpu_custom_call.1} parent=1 // loop_header_branch
      %20 = sbr.rel (%p18) target = $region8
    $region5: #{tpu_custom_call.1} parent=1 // loop_body
      %s22 = ssub.s32 %s17, 1
      %s23 = ssub.s32 %s17, 2
      %s33 = sadd.s32 1, %s26
      %p34 = scmp.ge.s32.totalorder %s33, 1
      %s35 = scalar_select %p34, 0, %s33
      %s36 = sadd.s32 1, %s25
      %s37 = scalar_select %p34, %s36, %s25
      %p38 = scmp.ge.s32.totalorder %s37, 1
      %s39 = scalar_select %p38, 0, %s37
      %s40 = sadd.s32 1, %s24
      %s41 = scalar_select %p38, %s40, %s24
      %p42 = scmp.ge.s32.totalorder %s41, 2
      %s43 = scalar_select %p42, 0, %s41
      %s44 = sadd.s32 %s25, %s26
      %s45 = sadd.s32 %s39, %s35
      %s46 = ssub.s32 %s24, %s43
      %s47 = ssub.s32 %s44, %s45
      %s48 = sor.u32 %s46, %s47
      %p49 = scmp.eq.s32.totalorder %s48, 0
      %s51 = sadd.s32 %s50, 1
      %s52 = scalar_select %p49, %s50, %s51
      %p55 = pneg %p49
      %p56 = scmp.eq.s32.totalorder %s17, 1
      %p57 = por %p55, %p56
      %p58 = scmp.ne.s32.totalorder %s50, %s53
      %p59 = scmp.eq.s32.totalorder %s17, 0
      %p60 = por %p58, %p59
      %p61 = scmp.ne.s32.totalorder %s50, %s53
      %p62 = scmp.eq.s32.totalorder %s22, 1
      %p63 = por %p61, %p62
      %p64 = scmp.ne.s32.totalorder %s53, %s54
      %p65 = scmp.eq.s32.totalorder %s22, 0
      %p66 = por %p64, %p65
      %p67 = scmp.ne.s32.totalorder %s53, %s54
      %p68 = scmp.eq.s32.totalorder %s23, 1
      %p69 = por %p67, %p68
      %p71 = scmp.ne.s32.totalorder %s54, %s70
      %p72 = scmp.eq.s32.totalorder %s23, 0
      %p73 = por %p71, %p72
      %s74 = sadd.s32 %s25, %s26
      %s75 = sadd.s32 %s39, %s35
      %s76 = ssub.s32 %s24, %s43
      %s77 = ssub.s32 %s74, %s75
      %s78 = sor.u32 %s76, %s77
      %p79 = scmp.eq.s32.totalorder %s78, 0
      %s81 = sadd.s32 %s80, 1
      %s82 = scalar_select %p79, %s80, %s81
      %p85 = pneg %p79
      %p86 = scmp.eq.s32.totalorder %s17, 1
      %p87 = por %p85, %p86
      %p88 = scmp.ne.s32.totalorder %s80, %s83
      %p89 = scmp.eq.s32.totalorder %s17, 0
      %p90 = por %p88, %p89
      %p91 = scmp.ne.s32.totalorder %s80, %s83
      %p92 = scmp.eq.s32.totalorder %s22, 1
      %p93 = por %p91, %p92
      %p94 = scmp.ne.s32.totalorder %s83, %s84
      %p95 = scmp.eq.s32.totalorder %s22, 0
      %p96 = por %p94, %p95
      %p97 = scmp.ne.s32.totalorder %s83, %s84
      %p98 = scmp.eq.s32.totalorder %s23, 1
      %p99 = por %p97, %p98
      %p101 = scmp.ne.s32.totalorder %s84, %s100
      %p102 = scmp.eq.s32.totalorder %s23, 0
      %p103 = por %p101, %p102
      %s104 = ssub.s32 %s24, %s43
      %s105 = ssub.s32 %s25, %s39
      %s106 = sor.u32 %s104, %s105
      %p107 = scmp.eq.s32.totalorder %s106, 0
      %s109 = sadd.s32 %s108, 1
      %s110 = scalar_select %p107, %s108, %s109
      %p113 = pneg %p107
      %p114 = scmp.eq.s32.totalorder %s17, 1
      %p115 = por %p113, %p114
      %p116 = scmp.ne.s32.totalorder %s108, %s111
      %p117 = scmp.eq.s32.totalorder %s17, 0
      %p118 = por %p116, %p117
      %p119 = scmp.ne.s32.totalorder %s108, %s111
      %p120 = scmp.eq.s32.totalorder %s22, 1
      %p121 = por %p119, %p120
      %p122 = scmp.ne.s32.totalorder %s111, %s112
      %p123 = scmp.eq.s32.totalorder %s22, 0
      %p124 = por %p122, %p123
      %p125 = scmp.ne.s32.totalorder %s111, %s112
      %p126 = scmp.eq.s32.totalorder %s23, 1
      %p127 = por %p125, %p126
      %p129 = scmp.ne.s32.totalorder %s112, %s128
      %p130 = scmp.eq.s32.totalorder %s23, 0
      %p131 = por %p129, %p130
      %p132 = scmp.le.s32.totalorder 1, %s17
      %p133 = scmp.lt.s32.totalorder %s17, 3
      %p134 = pnand %p132, %p133
      %p135 = pneg %p134
      // Predicated region
      $region9: #{tpu_custom_call.1} parent=5 // pred_check
        _
      $region10: #{tpu_custom_call.1} parent=5 // pred_check_branch
        %137 = sbr.rel (%p134) target = $region12
      $region11: #{tpu_custom_call.1} parent=5 // pred_region
        %s138 = ssub.s32 %s17, 1
      $region12: #{tpu_custom_call.1} parent=5 // pred_fallthru
        _
      %p139 = scmp.lt.s32.totalorder %s17, 2
      // Predicated region
      $region13: #{tpu_custom_call.1} parent=5 // pred_check
        %p140 = pneg %p139
      $region14: #{tpu_custom_call.1} parent=5 // pred_check_branch
        %142 = sbr.rel (%p140) target = $region16
      $region15: #{tpu_custom_call.1} parent=5 // pred_region
        // Predicated region
        $region17: #{tpu_custom_call.1} parent=15 // pred_check
          %p143 = pneg %p60
        $region18: #{tpu_custom_call.1} parent=15 // pred_check_branch
          %145 = sbr.rel (%p143) target = $region20
        $region19: #{tpu_custom_call.1} parent=15 // pred_region
          %s146 = sand.u32 %s50, 1
          %s147 = scalar_lea.sflag [#allocation3], %s146
          %s148 = sand.u32 %s50, 1
          %s149 = smul.addr %s148, 8
          %s150 = scalar_lea.vmem [#allocation2], %s149
          %s151 = sadd.s32 %s25, %s26
          %s152 = smul.u32 2, %s151
          %s154 = ssub.s32 128, 128
          %155 = vsyncadd %s147, %s154
          %s156 = smul.addr %s24, 2
          %s157 = sadd.s32 %s152, %s156
          %s158 = smul.addr %s157, 64
          %s159 = scalar_lea.hbm %s0, %s158
          %s161 = sshll.u32 %s150, 4
          %s162 = int_to_ptr.vmem [resolvable:$true] %s161
          %164 = dma.hbm_to_vmem [thread:$0]  %s159, 128, %s162, %s147
        $region20: #{tpu_custom_call.1} parent=15 // pred_fallthru
          _
        // Predicated region
        $region21: #{tpu_custom_call.1} parent=15 // pred_check
          %p165 = pneg %p90
        $region22: #{tpu_custom_call.1} parent=15 // pred_check_branch
          %167 = sbr.rel (%p165) target = $region24
        $region23: #{tpu_custom_call.1} parent=15 // pred_region
          %s168 = sand.u32 %s80, 1
          %s169 = scalar_lea.sflag [#allocation6], %s168
          %s170 = sand.u32 %s80, 1
          %s171 = smul.addr %s170, 2
          %s172 = scalar_lea.vmem [#allocation5], %s171
          %s173 = sadd.s32 %s25, %s26
          %s174 = smul.u32 2, %s173
          %s176 = ssub.s32 32, 32
          %177 = vsyncadd %s169, %s176
          %s178 = smul.addr %s24, 2
          %s179 = sadd.s32 %s174, %s178
          %s180 = smul.addr %s179, 16
          %s181 = scalar_lea.hbm %s1, %s180
          %s183 = sshll.u32 %s172, 4
          %s184 = int_to_ptr.vmem [resolvable:$true] %s183
          %186 = dma.hbm_to_vmem [thread:$0]  %s181, 32, %s184, %s169
        $region24: #{tpu_custom_call.1} parent=15 // pred_fallthru
          _
      $region16: #{tpu_custom_call.1} parent=5 // pred_fallthru
        _
      %p187 = scmp.le.s32.totalorder 1, %s17
      %p188 = scmp.lt.s32.totalorder %s17, 3
      %p189 = pnand %p187, %p188
      %p190 = pneg %p189
      // Predicated region
      $region25: #{tpu_custom_call.1} parent=5 // pred_check
        _
      $region26: #{tpu_custom_call.1} parent=5 // pred_check_branch
        %192 = sbr.rel (%p189) target = $region28
      $region27: #{tpu_custom_call.1} parent=5 // pred_region
        %s193 = ssub.s32 %s17, 1
        %s194 = sand.u32 %s53, 1
        %s195 = scalar_lea.sflag [#allocation3], %s194
        %s196 = sand.u32 %s53, 1
        %s197 = smul.addr %s196, 8
        %s198 = scalar_lea.vmem [#allocation2], %s197
        // Predicated region
        $region29: #{tpu_custom_call.1} parent=27 // pred_check
          %p199 = pneg %p66
        $region30: #{tpu_custom_call.1} parent=27 // pred_check_branch
          %201 = sbr.rel (%p199) target = $region32
        $region31: #{tpu_custom_call.1} parent=27 // pred_region
          %202 = dma.done %s195, 128
        $region32: #{tpu_custom_call.1} parent=27 // pred_fallthru
          _
        %s203 = sand.u32 %s83, 1
        %s204 = scalar_lea.sflag [#allocation6], %s203
        %s205 = sand.u32 %s83, 1
        %s206 = smul.addr %s205, 2
        %s207 = scalar_lea.vmem [#allocation5], %s206
        // Predicated region
        $region33: #{tpu_custom_call.1} parent=27 // pred_check
          %p208 = pneg %p96
        $region34: #{tpu_custom_call.1} parent=27 // pred_check_branch
          %210 = sbr.rel (%p208) target = $region36
        $region35: #{tpu_custom_call.1} parent=27 // pred_region
          %211 = dma.done %s204, 32
        $region36: #{tpu_custom_call.1} parent=27 // pred_fallthru
          _
        %s212 = sand.u32 %s53, 1
        %s213 = scalar_lea.sflag [#allocation3], %s212
        %s214 = sand.u32 %s53, 1
        %s215 = smul.addr %s214, 8
        %s216 = scalar_lea.vmem [#allocation2], %s215
        %p217 = pneg %p66
        %p218 = pneg %p63
        %s219 = sand.u32 %s83, 1
        %s220 = scalar_lea.sflag [#allocation6], %s219
        %s221 = sand.u32 %s83, 1
        %s222 = smul.addr %s221, 2
        %s223 = scalar_lea.vmem [#allocation5], %s222
        %p224 = pneg %p96
        %p225 = pneg %p93
        %p226 = pneg %p124
        %p227 = pneg %p121
        %s228 = sand.u32 %s111, 1
        %s229 = scalar_lea.sflag [#allocation4], %s228
        %s230 = sand.u32 %s111, 1
        %s231 = smul.addr %s230, 2
        %s232 = scalar_lea.vmem [#allocation7], %s231
        %s233 = sadd.s32 %s28, %s29
        %s234 = smul.u32 2, %s233
        %s235 = sadd.s32 %s28, %s29
        %s236 = smul.u32 2, %s235
        %p237 = scmp.eq.s32.totalorder %s29, 0
        // Predicated region
        $region37: #{tpu_custom_call.1} parent=27 // pred_check
          %p238 = pneg %p237
        $region38: #{tpu_custom_call.1} parent=27 // pred_check_branch
          %240 = sbr.rel (%p238) target = $region40
        $region39: #{tpu_custom_call.1} parent=27 // pred_region
          %v241 = vlaneseq
          %vm242 = vcmp.ge.s32.totalorder %v241, 0
          %vm243 = vcmp.lt.s32.totalorder %v241, 256
          %vm244 = vmand %vm242, %vm243
          %245 = vst.msk [vmem:[%s232] sm:$0x3] %vm244, 0.0
        $region40: #{tpu_custom_call.1} parent=27 // pred_fallthru
          _
        %v246 = vld [vmem:[%s198] sm:$0xff]
        %v247 = vld [vmem:[%s207] sm:$0x3]
        %v248 = vlaneseq
        %v249 = vshrl.u32 %v248, 7
        %v250 = vlaneseq
        %v251 = vshrl.u32 %v250, 7
        %v252 = vsub.s32 0, %v251
        %v253 = vrot.slane %v247, %v252
        %v254 = vlaneseq
        %v255 = vshrl.u32 %v254, 7
        %v256 = vsub.s32 1, %v255
        %v257 = vrot.slane %v247, %v256
        %vm258 = vcmp.eq.s32.totalorder %v249, %v253
        %vm259 = vcmp.eq.s32.totalorder %v249, %v257
        %v261 = vcombine.high %v246, %v246
        %vm263 = vcmask 1043456
        %v264 = vsel %vm263, %v246, -inf
        %v265 = vrot.slane %v264, 4
        %v266 = vmax.f32 %v264, %v265
        %v267 = vrot.slane %v266, 2
        %v268 = vmax.f32 %v266, %v267
        %v269 = vrot.slane %v268, 1
        %v270 = vmax.f32 %v268, %v269
        %v271 = vsel %vm263, %v261, -inf
        %v272 = vrot.slane %v271, 4
        %v273 = vmax.f32 %v271, %v272
        %v274 = vrot.slane %v273, 2
        %v275 = vmax.f32 %v273, %v274
        %v276 = vrot.slane %v275, 1
        %v277 = vmax.f32 %v275, %v276
        %v280 = vcombine.low %v270, %v277
        %v282 = vsub.f32 %v246, %v280
        %v283 = vmul.f32 %v282, 1.442695
        %v284 = vpow.pop %v283
        %v286 = vcombine.high %v284, %v284
        %v288 = vsel %vm263, %v284, 0.0
        %v289 = vrot.slane %v288, 4
        %v290 = vadd.f32 %v288, %v289
        %v291 = vrot.slane %v290, 2
        %v292 = vadd.f32 %v290, %v291
        %v293 = vrot.slane %v292, 1
        %v294 = vadd.f32 %v292, %v293
        %v295 = vsel %vm263, %v286, 0.0
        %v296 = vrot.slane %v295, 4
        %v297 = vadd.f32 %v295, %v296
        %v298 = vrot.slane %v297, 2
        %v299 = vadd.f32 %v297, %v298
        %v300 = vrot.slane %v299, 1
        %v301 = vadd.f32 %v299, %v300
        %v302 = vlog2.pop %v294
        %v303 = vmul.f32 %v302, 0.6931472
        %v304 = vlog2.pop %v301
        %v305 = vmul.f32 %v304, 0.6931472
        %v306 = vadd.f32 %v270, %v303
        %v307 = vadd.f32 %v277, %v305
        %v308 = vsel %vm258, %v246, -inf
        %v309 = vsel %vm259, %v261, -inf
        %v310 = vsel %vm263, %v308, -inf
        %v311 = vrot.slane %v310, 4
        %v312 = vmax.f32 %v310, %v311
        %v313 = vrot.slane %v312, 2
        %v314 = vmax.f32 %v312, %v313
        %v315 = vrot.slane %v314, 1
        %v316 = vmax.f32 %v314, %v315
        %v317 = vsel %vm263, %v309, -inf
        %v318 = vrot.slane %v317, 4
        %v319 = vmax.f32 %v317, %v318
        %v320 = vrot.slane %v319, 2
        %v321 = vmax.f32 %v319, %v320
        %v322 = vrot.slane %v321, 1
        %v323 = vmax.f32 %v321, %v322
        %v324 = vsub.f32 %v316, %v306
        %v325 = vsub.f32 %v323, %v307
        %v326 = vmax.f32 %v324, -18.420681
        %v327 = vmax.f32 %v325, -18.420681
        %v328 = vmin.f32 %v326, -1e-08
        %v329 = vmin.f32 %v327, -1e-08
        %v330 = vmul.f32 %v328, 1.442695
        %v331 = vpow.pop %v330
        %v332 = vmul.f32 %v329, 1.442695
        %v333 = vpow.pop %v332
        %v334 = vsub.f32 1.0, %v331
        %v335 = vsub.f32 1.0, %v333
        %v336 = vmul.f32 %v334, %v334
        %v337 = vmul.f32 %v335, %v335
        %v338 = vsub.f32 0.0, %v336
        %v339 = vsub.f32 0.0, %v337
        %v340 = vmul.f32 %v338, %v328
        %v341 = vmul.f32 %v339, %v329
        %v342 = vld [vmem:[%s232] sm:$0x3]
        %v345 = vcombine.low %v340, %v341
        %v347 = vunpack.c.l.s4 1966171168
        %v348 = vunpack.c.0.s8 %v347
        %v349 = vlaneseq
        %v350 = vshrl.u32 %v349, 7
        %v351 = vsub.s32 %v348, %v350
        %v352 = vrot.slane %v345, %v351
        %v354 = vunpack.c.l.s4 1966171168
        %v355 = vunpack.c.0.s8 %v354
        %v356 = vlaneseq
        %v357 = vshrl.u32 %v356, 7
        %v358 = vsub.s32 %v355, %v357
        %v359 = vrot.slane %v352, %v358
        %v361 = vadd.f32 %v342, %v359
        %v362 = vlaneseq
        %vm363 = vcmp.ge.s32.totalorder %v362, 0
        %vm364 = vcmp.lt.s32.totalorder %v362, 256
        %vm365 = vmand %vm363, %vm364
        %366 = vst.msk [vmem:[%s232] sm:$0x3] %vm365, %v361
        %s367 = sand.u32 %s111, 1
        %s368 = scalar_lea.sflag [#allocation4], %s367
        %s369 = sand.u32 %s111, 1
        %s370 = smul.addr %s369, 2
        %s371 = scalar_lea.vmem [#allocation7], %s370
        // Predicated region
        $region41: #{tpu_custom_call.1} parent=27 // pred_check
          %p372 = pneg %p121
        $region42: #{tpu_custom_call.1} parent=27 // pred_check_branch
          %374 = sbr.rel (%p372) target = $region44
        $region43: #{tpu_custom_call.1} parent=27 // pred_region
          %s376 = ssub.s32 32, 32
          %377 = vsyncadd %s368, %s376
          %s378 = smul.addr %s28, 2
          %s379 = smul.addr %s27, 2
          %s380 = sadd.s32 %s378, %s379
          %s381 = smul.addr %s380, 16
          %s382 = scalar_lea.hbm %s2, %s381
          %s384 = sshll.u32 %s371, 4
          %s385 = int_to_ptr.vmem [resolvable:$true] %s384
          %387 = dma.vmem_to_hbm [thread:$0]  %s385, 32, %s382, %s368
        $region44: #{tpu_custom_call.1} parent=27 // pred_fallthru
          _
      $region28: #{tpu_custom_call.1} parent=5 // pred_fallthru
        _
      %p388 = scmp.le.s32.totalorder 2, %s17
      // Predicated region
      $region45: #{tpu_custom_call.1} parent=5 // pred_check
        %p389 = pneg %p388
      $region46: #{tpu_custom_call.1} parent=5 // pred_check_branch
        %391 = sbr.rel (%p389) target = $region48
      $region47: #{tpu_custom_call.1} parent=5 // pred_region
        %s392 = ssub.s32 %s17, 2
        // Predicated region
        $region49: #{tpu_custom_call.1} parent=47 // pred_check
          %p393 = pneg %p127
        $region50: #{tpu_custom_call.1} parent=47 // pred_check_branch
          %395 = sbr.rel (%p393) target = $region52
        $region51: #{tpu_custom_call.1} parent=47 // pred_region
          %s396 = sand.u32 %s112, 1
          %s397 = scalar_lea.sflag [#allocation4], %s396
          %s398 = sand.u32 %s112, 1
          %s399 = smul.addr %s398, 2
          %s400 = scalar_lea.vmem [#allocation7], %s399
          %401 = dma.done %s397, 32
        $region52: #{tpu_custom_call.1} parent=47 // pred_fallthru
          _
      $region48: #{tpu_custom_call.1} parent=5 // pred_fallthru
        _
    $region6: #{tpu_custom_call.1} parent=1 // loop_footer
      %s21 = sadd.s32 1, %s17
    $region7: #{tpu_custom_call.1} parent=1 // loop_footer_branch
      %16 = sbr.rel target = $region3
    $region8: #{tpu_custom_call.1} parent=1 // loop_exit
      _
    %402 = vsyncpa [#allocation3], 1
    %s403 = scalar_lea.sflag [#allocation3], 1
    %404 = vsyncpa %s403, 1
    %405 = vsyncpa [#allocation6], 1
    %s406 = scalar_lea.sflag [#allocation6], 1
    %407 = vsyncpa %s406, 1
    %408 = vsyncpa [#allocation4], 1
    %s409 = scalar_lea.sflag [#allocation4], 1
    %410 = vsyncpa %s409, 1

</llo_original>
